<compile_context>
chip_gen: v5e
topology: v5e:2x2
jax: 0.10.0
libtpu: 0.0.40
codegen_flags: <defaults>
</compile_context>

<pallas_src>
import math
from functools import partial

import jax
import jax.numpy as jnp
from jax.experimental import pallas as pl
from jax.experimental.pallas import tpu as pltpu

BN_EPS = 1e-5
LANE = 128                       # channel dims padded to a multiple of this
COMPUTE_DTYPE = jnp.bfloat16     # activations / weights; accumulation is f32
VMEM_LIMIT = 32 * 1024 * 1024

# Small compat shim (reference API name is pltpu.CompilerParams).
_CompilerParams = getattr(pltpu, "CompilerParams", None) or getattr(
    pltpu, "TPUCompilerParams", None)


def _round_up(x, m):
    return ((x + m - 1) // m) * m


def _pad_c(c):
    return _round_up(c, LANE)


def _mosaic_params(num_parallel_axes):
    if _CompilerParams is None:
        return None
    return _CompilerParams(
        dimension_semantics=("parallel",) * num_parallel_axes,
        vmem_limit_bytes=VMEM_LIMIT)


# --------------------------------------------------------------------------
# Pallas kernels
# --------------------------------------------------------------------------
def _mm_bias_kernel(a_ref, w_ref, b_ref, o_ref, *, relu):
    # (tm, K) @ (K, N) + (1, N) [+ ReLU], f32 accumulation, bf16 store.
    acc = jnp.dot(a_ref[...], w_ref[...], preferred_element_type=jnp.float32)
    acc = acc + b_ref[...]
    if relu:
        acc = jnp.maximum(acc, 0.0)
    o_ref[...] = acc.astype(o_ref.dtype)


def _conv3x3_s1_kernel(a_ref, w_ref, b_ref, o_ref, *, img_w):
    # Fused RepVGG block (3x3 conv, branches pre-folded) without HBM im2col.
    #   a_ref: (1, M_ext, Cin)  one image, spatially zero-padded, row-flattened,
    #                           plus one extra flat zero row at each end.
    #   w_ref: (9, Cin, Cout)   per-tap weight matrices (1x1 / identity folded in).
    #   b_ref: (1, Cout) f32
    #   o_ref: (1, M_out, Cout) width-padded output rows, M_out = H*(W+2).
    m_out = o_ref.shape[1]
    row = img_w + 2
    acc = jnp.zeros((m_out, o_ref.shape[2]), jnp.float32)
    for dy in range(3):
        for dx in range(3):
            off = dy * row + dx                       # static offset per tap
            acc = acc + jnp.dot(a_ref[0, off:off + m_out, :],
                                w_ref[dy * 3 + dx],
                                preferred_element_type=jnp.float32)
    acc = acc + b_ref[...]
    o_ref[0] = jnp.maximum(acc, 0.0).astype(o_ref.dtype)


# --------------------------------------------------------------------------
# Kernel wrappers
# --------------------------------------------------------------------------
def _pick_tm(m):
    # Lane/sublane-aligned M tile; tail blocks handled by pl.cdiv (masked stores).
    for t in (512, 256, 128):
        if m >= t:
            return t
    return max(8, _round_up(m, 8))


def matmul_bias(a, w, b, relu):
    m, k = a.shape
    n = w.shape[1]
    tm = _pick_tm(m)
    # TODO(synk): add a K grid axis + f32 VMEM accumulator for very large K
    # (real YOLOv6 widths); not needed at these sizes.
    return pl.pallas_call(
        partial(_mm_bias_kernel, relu=relu),
        out_shape=jax.ShapeDtypeStruct((m, n), COMPUTE_DTYPE),
        grid=(pl.cdiv(m, tm),),
        in_specs=[
            pl.BlockSpec((tm, k), lambda i: (i, 0)),
            pl.BlockSpec((k, n), lambda i: (0, 0)),
            pl.BlockSpec((1, n), lambda i: (0, 0)),
        ],
        out_specs=pl.BlockSpec((tm, n), lambda i: (i, 0)),
        compiler_params=_mosaic_params(1),
    )(a, w, b)


def repvgg_conv(x, taps, bias):
    # x: (N, H, W, Cin) bf16 (channels lane-padded); taps: (9, Cin, Cout) bf16.
    n, h, w, cin = x.shape
    cout = taps.shape[2]
    m_out = h * (w + 2)
    m_ext = (h + 2) * (w + 2) + 2
    # Glue: 1x spatial zero-pad + row flatten (no 9x im2col round trip to HBM).
    xp = jnp.pad(x, ((0, 0), (1, 1), (1, 1), (0, 0)))
    a = xp.reshape(n, (h + 2) * (w + 2), cin)
    a = jnp.pad(a, ((0, 0), (1, 1), (0, 0)))          # (N, M_ext, Cin)
    out = pl.pallas_call(
        partial(_conv3x3_s1_kernel, img_w=w),
        out_shape=jax.ShapeDtypeStruct((n, m_out, cout), COMPUTE_DTYPE),
        grid=(n,),
        in_specs=[
            pl.BlockSpec((1, m_ext, cin), lambda i: (i, 0, 0)),
            pl.BlockSpec((9, cin, cout), lambda i: (0, 0, 0)),
            pl.BlockSpec((1, cout), lambda i: (0, 0)),
        ],
        out_specs=pl.BlockSpec((1, m_out, cout), lambda i: (i, 0, 0)),
        compiler_params=_mosaic_params(1),
    )(a, taps, bias)
    # Drop the two width-pad columns -> clean NHWC.
    # TODO(synk): for large feature maps, additionally tile over image rows
    # (with a 1-row halo) instead of holding the whole image per grid step.
    return out.reshape(n, h, w + 2, cout)[:, :, 1:w + 1, :]


def _im2col_3x3(x, stride):
    # Only used for the two stride-2 downsample convs (small maps).
    # TODO(synk): fold the strided tap gather into the kernel as well.
    n, h, w, c = x.shape
    xp = jnp.pad(x, ((0, 0), (1, 1), (1, 1), (0, 0)))
    ho = (h + 2 - 3) // stride + 1
    wo = (w + 2 - 3) // stride + 1
    cols = []
    for dy in range(3):
        for dx in range(3):
            cols.append(xp[:, dy:dy + stride * (ho - 1) + 1:stride,
                           dx:dx + stride * (wo - 1) + 1:stride, :])
    p = jnp.concatenate(cols, axis=-1)
    return p.reshape(n * ho * wo, 9 * c), (n, ho, wo)


def simconv1x1(x, params):
    wm, b = params
    n, h, w, cin = x.shape
    cout = wm.shape[1]
    out = matmul_bias(x.reshape(-1, cin), wm, b, relu=True)
    return out.reshape(n, h, w, cout)


def simconv3x3_s2(x, params):
    wm, b = params
    a, (n, ho, wo) = _im2col_3x3(x, 2)
    cout = wm.shape[1]
    out = matmul_bias(a, wm, b, relu=True)
    return out.reshape(n, ho, wo, cout)


def transpose_up(x, params):
    # ConvTranspose2d(k=2, s=2, bias=True): matmul to a lane-dense 4*Cout slab,
    # then 2x2 pixel interleave in glue.
    wm, bt = params
    n, h, w, cin = x.shape
    cout = wm.shape[1] // 4
    y = matmul_bias(x.reshape(-1, cin), wm, bt, relu=False)
    y = y.reshape(n, h, w, 2, 2, cout)
    # TODO(synk): fuse this 2x2 interleave into the kernel via the out BlockSpec.
    return jnp.transpose(y, (0, 1, 3, 2, 4, 5)).reshape(n, 2 * h, 2 * w, cout)


# --------------------------------------------------------------------------
# Parameter setup (all layout work done once here, not per forward call)
# --------------------------------------------------------------------------
class KeyGen:
    def __init__(self, key):
        self.key = key

    def next(self):
        self.key, sub = jax.random.split(self.key)
        return sub


def init_bn(kg, c):
    g = jax.random.uniform(kg.next(), (c,), jnp.float32, 0.5, 1.5)
    b = jax.random.normal(kg.next(), (c,), jnp.float32) * 0.1
    m = jax.random.normal(kg.next(), (c,), jnp.float32) * 0.1
    v = jax.random.uniform(kg.next(), (c,), jnp.float32, 0.5, 1.5)
    return g, b, m, v


def fold_bn(w, gamma, beta, mean, var):
    # w: (Cout, Cin, kh, kw), conv bias=False; exact eval-mode BN fold.
    scale = gamma / jnp.sqrt(var + BN_EPS)
    return w * scale[:, None, None, None], beta - mean * scale


def init_conv_bn(kg, cin, cout, k):
    w = jax.random.normal(kg.next(), (cout, cin, k, k), jnp.float32) * 0.1
    return fold_bn(w, *init_bn(kg, cout))


def _embed_rows(mat, segments):
    # mat: (Cin_real_total, X); segments: [(real, padded), ...] input-channel layout.
    parts, start = [], 0
    for real, padded in segments:
        blk = mat[start:start + real]
        parts.append(jnp.pad(blk, ((0, padded - real), (0, 0))))
        start += real
    return jnp.concatenate(parts, axis=0)


def _pad_cols(mat, coutp):
    return jnp.pad(mat, ((0, 0), (0, coutp - mat.shape[1])))


def _pad_bias(b, coutp):
    return jnp.pad(b, (0, coutp - b.shape[0])).reshape(1, coutp)


def prep_simconv1x1(kg, cin, cout):
    w, b = init_conv_bn(kg, cin, cout, 1)
    cinp, coutp = _pad_c(cin), _pad_c(cout)
    wm = _pad_cols(_embed_rows(w.reshape(cout, cin).T, [(cin, cinp)]), coutp)
    return wm.astype(COMPUTE_DTYPE), _pad_bias(b, coutp)


def prep_simconv3x3(kg, cin, cout):
    w, b = init_conv_bn(kg, cin, cout, 3)
    cinp, coutp = _pad_c(cin), _pad_c(cout)
    taps = jnp.transpose(w, (2, 3, 1, 0))                    # (3,3,cin,cout)
    taps = jnp.pad(taps, ((0, 0), (0, 0), (0, cinp - cin), (0, coutp - cout)))
    wm = taps.reshape(9 * cinp, coutp).astype(COMPUTE_DTYPE)  # matches im2col order
    return wm, _pad_bias(b, coutp)


def prep_transpose(kg, cin, cout):
    w = jax.random.normal(kg.next(), (cin, cout, 2, 2), jnp.float32) * 0.1
    b = jax.random.normal(kg.next(), (cout,), jnp.float32) * 0.1
    cinp, coutp = _pad_c(cin), _pad_c(cout)
    wt = jnp.transpose(w, (0, 2, 3, 1))                      # (cin, ky, kx, cout)
    wt = jnp.pad(wt, ((0, cinp - cin), (0, 0), (0, 0), (0, coutp - cout)))
    wm = wt.reshape(cinp, 4 * coutp).astype(COMPUTE_DTYPE)
    bt = jnp.tile(jnp.pad(b, (0, coutp - cout)), 4).reshape(1, 4 * coutp)
    return wm, bt


def prep_repvgg(kg, segments, cout):
    # RepVGG eval-mode re-parameterization: 1x1 branch and identity-BN branch
    # are folded into the 3x3 weight's center tap. segments = input channel layout.
    cin = sum(r for r, _ in segments)
    coutp = _pad_c(cout)
    w3, b3 = init_conv_bn(kg, cin, cout, 3)
    w1, b1 = init_conv_bn(kg, cin, cout, 1)
    bias = b3 + b1
    w3 = w3.at[:, :, 1, 1].add(w1[:, :, 0, 0])
    if cin == cout:                       # identity BN branch (stride=1, in==out)
        g, bb, m, v = init_bn(kg, cin)
        scale = g / jnp.sqrt(v + BN_EPS)
        shift = bb - m * scale
        w3 = w3.at[:, :, 1, 1].add(jnp.diag(scale))
        bias = bias + shift
    taps = jnp.transpose(w3, (2, 3, 1, 0)).reshape(9, cin, cout)   # (tap, Cin, Cout)
    taps = jnp.stack([_embed_rows(taps[t], segments) for t in range(9)], axis=0)
    taps = jnp.pad(taps, ((0, 0), (0, 0), (0, coutp - cout))).astype(COMPUTE_DTYPE)
    return taps, _pad_bias(bias, coutp)


def prep_repblock(kg, in_segments, cout, n):
    coutp = _pad_c(cout)
    blocks = [prep_repvgg(kg, in_segments, cout)]
    for _ in range(n - 1):
        blocks.append(prep_repvgg(kg, [(cout, coutp)], cout))
    return blocks


# --------------------------------------------------------------------------
# RepPANNeck
# --------------------------------------------------------------------------
def make_divisible(x, divisor):
    return math.ceil(x / divisor) * divisor


class RepPANNeckPallas:
    def __init__(self, channels_list, depth_multiple=1.0, width_multiple=1.0,
                 num_repeats=(12, 12, 12, 12), key=None):
        num_repeats = [max(round(i * depth_multiple), 1) if i > 1 else i
                       for i in num_repeats]
        ch = [make_divisible(i * width_multiple, 8) for i in channels_list]
        self.ch = ch
        kg = KeyGen(key if key is not None else jax.random.PRNGKey(0))

        def seg(c):
            return (c, _pad_c(c))

        # Segments follow the forward-pass concat order.
        self.Rep_p4 = prep_repblock(kg, [seg(ch[5]), seg(ch[3])], ch[5], num_repeats[0])
        self.Rep_p3 = prep_repblock(kg, [seg(ch[6]), seg(ch[2])], ch[6], num_repeats[1])
        self.Rep_n3 = prep_repblock(kg, [seg(ch[7]), seg(ch[6])], ch[8], num_repeats[2])
        self.Rep_n4 = prep_repblock(kg, [seg(ch[9]), seg(ch[5])], ch[10], num_repeats[3])
        self.reduce_layer0 = prep_simconv1x1(kg, ch[4], ch[5])
        self.upsample0 = prep_transpose(kg, ch[5], ch[5])
        self.reduce_layer1 = prep_simconv1x1(kg, ch[5], ch[6])
        self.upsample1 = prep_transpose(kg, ch[6], ch[6])
        self.downsample2 = prep_simconv3x3(kg, ch[6], ch[7])
        self.downsample1 = prep_simconv3x3(kg, ch[8], ch[9])

    @staticmethod
    def _to_padded_nhwc(t):
        t = jnp.transpose(t.astype(COMPUTE_DTYPE), (0, 2, 3, 1))
        c = t.shape[-1]
        return jnp.pad(t, ((0, 0), (0, 0), (0, 0), (0, _pad_c(c) - c)))

    def __call__(self, inputs_nchw):
        # inputs: (x2, x1, x0), NCHW like the PyTorch module.
        x2, x1, x0 = [self._to_padded_nhwc(t) for t in inputs_nchw]

        def run_rep(x, blocks):
            for taps, b in blocks:
                x = repvgg_conv(x, taps, b)
            return x

        fpn_out0 = simconv1x1(x0, self.reduce_layer0)
        up0 = transpose_up(fpn_out0, self.upsample0)
        # TODO(synk): pass concat operands as separate kernel inputs (two K-slices
        # into the same accumulator) to avoid the HBM concat of the fused map.
        f_cat0 = jnp.concatenate([up0, x1], axis=-1)
        f_out0 = run_rep(f_cat0, self.Rep_p4)

        fpn_out1 = simconv1x1(f_out0, self.reduce_layer1)
        up1 = transpose_up(fpn_out1, self.upsample1)
        f_cat1 = jnp.concatenate([up1, x2], axis=-1)
        pan_out2 = run_rep(f_cat1, self.Rep_p3)

        down1 = simconv3x3_s2(pan_out2, self.downsample2)
        p_cat1 = jnp.concatenate([down1, fpn_out1], axis=-1)
        pan_out1 = run_rep(p_cat1, self.Rep_n3)

        down0 = simconv3x3_s2(pan_out1, self.downsample1)
        p_cat2 = jnp.concatenate([down0, fpn_out0], axis=-1)
        pan_out0 = run_rep(p_cat2, self.Rep_n4)

        outs = [(pan_out2, self.ch[6]), (pan_out1, self.ch[8]), (pan_out0, self.ch[10])]
        # Slice real channels, back to NCHW float32.
        return [jnp.transpose(o[..., :c], (0, 3, 1, 2)).astype(jnp.float32)
                for o, c in outs]


if __name__ == "__main__":
    # Small synthetic config (channels multiples of 8, lane-padded internally).
    channels_list = [8, 8, 8, 16, 32, 16, 8, 8, 16, 16, 32]
    neck = RepPANNeckPallas(channels_list,
                            depth_multiple=2.0 / 12.0,   # -> n=2 per RepBlock
                            width_multiple=1.0,
                            num_repeats=(12, 12, 12, 12),
                            key=jax.random.PRNGKey(0))

    key = jax.random.PRNGKey(0)
    k2, k1, k0 = jax.random.split(key, 3)
    # NCHW inputs: x2 (stride 8), x1 (stride 16), x0 (stride 32)
    x2 = jax.random.normal(k2, (2, channels_list[2], 16, 16), jnp.float32)
    x1 = jax.random.normal(k1, (2, channels_list[3], 8, 8), jnp.float32)
    x0 = jax.random.normal(k0, (2, channels_list[4], 4, 4), jnp.float32)

    outs = neck((x2, x1, x0))
    outs = jax.block_until_ready(outs)

    expected_shapes = [(2, 8, 16, 16), (2, 16, 8, 8), (2, 32, 4, 4)]
    assert [tuple(o.shape) for o in outs] == expected_shapes, \
        [tuple(o.shape) for o in outs]
    assert all(bool(jnp.all(jnp.isfinite(o))) for o in outs)
    print("KERNEL_OK")
</pallas_src>

<mosaic_0001>
module attributes {stable_mosaic.version = 11 : i64} {
  func.func @_mm_bias_kernel(%arg0: i32, %arg1: memref<32x128xbf16, #tpu.memory_space<vmem>>, %arg2: memref<128x128xbf16, #tpu.memory_space<vmem>>, %arg3: memref<1x128xf32, #tpu.memory_space<vmem>>, %arg4: memref<32x128xbf16, #tpu.memory_space<vmem>>) attributes {dimension_semantics = [#tpu.dimension_semantics<parallel>], iteration_bounds = array<i64: 1>, scalar_prefetch = 0 : i64, scratch_operands = 0 : i64, tpu.core_type = #tpu.core_type<tc>, window_params = [{transform_indices = @transform_0, window_bounds = array<i64: 32, 128>}, {pipeline_mode = #tpu.pipeline_mode<synchronous>, transform_indices = @transform_1, window_bounds = array<i64: 128, 128>}, {pipeline_mode = #tpu.pipeline_mode<synchronous>, transform_indices = @transform_2, window_bounds = array<i64: 1, 128>}, {transform_indices = @transform_3, window_bounds = array<i64: 32, 128>}]} {
    %c0 = arith.constant 0 : index
    %c0_0 = arith.constant 0 : index
    %0 = vector.load %arg1[%c0, %c0_0] : memref<32x128xbf16, #tpu.memory_space<vmem>>, vector<32x128xbf16>
    %c0_1 = arith.constant 0 : index
    %c0_2 = arith.constant 0 : index
    %1 = vector.load %arg2[%c0_1, %c0_2] : memref<128x128xbf16, #tpu.memory_space<vmem>>, vector<128x128xbf16>
    %cst = arith.constant dense<0.000000e+00> : vector<32x128xf32>
    %2 = tpu.matmul %0, %1, %cst {dimension_numbers = #tpu.dot_dimension_numbers<[1], [0], [0], [1], [0, 0, 1, 1], [], []>} : vector<32x128xbf16>, vector<128x128xbf16>, vector<32x128xf32> -> vector<32x128xf32>
    %c0_3 = arith.constant 0 : index
    %c0_4 = arith.constant 0 : index
    %3 = vector.load %arg3[%c0_3, %c0_4] : memref<1x128xf32, #tpu.memory_space<vmem>>, vector<1x128xf32>
    %4 = vector.broadcast %3 : vector<1x128xf32> to vector<32x128xf32>
    %5 = arith.addf %2, %4 : vector<32x128xf32>
    %cst_5 = arith.constant 0.000000e+00 : f32
    %6 = vector.broadcast %cst_5 : f32 to vector<32x128xf32>
    %7 = arith.maximumf %5, %6 : vector<32x128xf32>
    %8 = arith.truncf %7 : vector<32x128xf32> to vector<32x128xbf16>
    %c0_6 = arith.constant 0 : index
    %c0_7 = arith.constant 0 : index
    %9 = vector.load %arg4[%c0_6, %c0_7] : memref<32x128xbf16, #tpu.memory_space<vmem>>, vector<32x128xbf16>
    tpu.vector_store %arg4[%c0_6, %c0_7], %8 {strides = array<i32>} : memref<32x128xbf16, #tpu.memory_space<vmem>>, vector<32x128xbf16>,
    return
  }
  func.func @transform_0(%arg0: i32) -> (i32, i32) {
    %c0_i32 = arith.constant 0 : i32
    %c0_i32_0 = arith.constant 0 : i32
    return %arg0, %c0_i32 : i32, i32
  }
  func.func @transform_1(%arg0: i32) -> (i32, i32) {
    %c0_i32 = arith.constant 0 : i32
    %c0_i32_0 = arith.constant 0 : i32
    %c0_i32_1 = arith.constant 0 : i32
    return %c0_i32, %c0_i32_0 : i32, i32
  }
  func.func @transform_2(%arg0: i32) -> (i32, i32) {
    %c0_i32 = arith.constant 0 : i32
    %c0_i32_0 = arith.constant 0 : i32
    %c0_i32_1 = arith.constant 0 : i32
    return %c0_i32, %c0_i32_0 : i32, i32
  }
  func.func @transform_3(%arg0: i32) -> (i32, i32) {
    %c0_i32 = arith.constant 0 : i32
    %c0_i32_0 = arith.constant 0 : i32
    return %arg0, %c0_i32 : i32, i32
  }
}

</mosaic_0001>

<llo_original>
// kernel: tpu_custom_call.1
$region0: #{tpu_custom_call.1}
  #allocation0 [shape = 'u32[]', space=smem, size = 0x4, offset = 0x4, fixed_abs, tag = 'smem constant byte address 0x4 - core index']
  #allocation1 [shape = 'u32[72,128]{1,0:T(1,128)}', space=vmem, size = 0x9000, scoped, tag = 'internal scratch']
  %s0 = inlined_call_operand.hbm [shape: bf16[32,128], index: 0, kind: input, shape index: {}]
  %s1 = inlined_call_operand.hbm [shape: bf16[128,128], index: 1, kind: input, shape index: {}]
  %s2 = inlined_call_operand.vmem [shape: f32[1,128], index: 2, kind: input, shape index: {}]
  %s3 = inlined_call_operand.hbm [shape: bf16[32,128], index: 3, kind: output, shape index: {}]
  %s4 = sld [smem:[#allocation0]]
  $region30: #{tpu_custom_call.1} parent=0
    _
  %s6 = ssub.s32 1, %s4
  %s7 = scalar_select 0, %s6, %s4
  $region1: #{tpu_custom_call.1} parent=0
    #allocation2 [shape = 'u8[8192]{0}', space=vmem, size = 0x2000, scoped, tag = 'input window, operand 0, single buffered']
    #allocation3 [shape = 's32[1]{0}', space=sflag, size = 0x4, scoped, tag = 'scoped memory for tpu_custom_call.1']
    #allocation4 [shape = 's32[1]{0}', space=sflag, size = 0x4, scoped, tag = 'scoped memory for tpu_custom_call.1']
    #allocation5 [shape = 'u8[32768]{0}', space=vmem, size = 0x8000, scoped, tag = 'input window, operand 1, single buffered']
    #allocation6 [shape = 's32[1]{0}', space=sflag, size = 0x4, scoped, tag = 'scoped memory for tpu_custom_call.1']
    #allocation7 [shape = 'u8[8192]{0}', space=vmem, size = 0x2000, scoped, tag = 'output window, operand 0, single buffered']
    %8 = vsyncpa [#allocation3], 0
    %9 = vsyncpa [#allocation6], 0
    %10 = vsyncpa [#allocation4], 0
    // Predicated region
    $region2: #{tpu_custom_call.1} parent=1 // pred_check
      _
    $region3: #{tpu_custom_call.1} parent=1 // pred_check_branch
      %12 = sbr.rel (0) target = $region5
    $region4: #{tpu_custom_call.1} parent=1 // pred_region
      %14 = vsyncadd [#allocation3], 0
      %s15 = sshll.u32 %s0, 4
      %s16 = int_to_ptr.hbm [resolvable:$true] %s15
      %s17 = sshll.u32 [#allocation2], 4
      %s18 = int_to_ptr.vmem [resolvable:$true] %s17
      %23 = dma.hbm_to_vmem [thread:$0]  %s16, 256, %s18, [#allocation3], 64, 64, 4
    $region5: #{tpu_custom_call.1} parent=1 // pred_fallthru
      _
    // Predicated region
    $region6: #{tpu_custom_call.1} parent=1 // pred_check
      _
    $region7: #{tpu_custom_call.1} parent=1 // pred_check_branch
      %25 = sbr.rel (0) target = $region9
    $region8: #{tpu_custom_call.1} parent=1 // pred_region
      %27 = vsyncadd [#allocation6], 0
      %s28 = sshll.u32 %s1, 4
      %s29 = int_to_ptr.hbm [resolvable:$true] %s28
      %s30 = sshll.u32 [#allocation5], 4
      %s31 = int_to_ptr.vmem [resolvable:$true] %s30
      %36 = dma.hbm_to_vmem [thread:$0]  %s29, 1024, %s31, [#allocation6], 64, 64, 4
    $region9: #{tpu_custom_call.1} parent=1 // pred_fallthru
      _
    // Predicated region
    $region10: #{tpu_custom_call.1} parent=1 // pred_check
      _
    $region11: #{tpu_custom_call.1} parent=1 // pred_check_branch
      %38 = sbr.rel (0) target = $region13
    $region12: #{tpu_custom_call.1} parent=1 // pred_region
      _
    $region13: #{tpu_custom_call.1} parent=1 // pred_fallthru
      _
    // Predicated region
    $region14: #{tpu_custom_call.1} parent=1 // pred_check
      _
    $region15: #{tpu_custom_call.1} parent=1 // pred_check_branch
      %40 = sbr.rel (0) target = $region17
    $region16: #{tpu_custom_call.1} parent=1 // pred_region
      %42 = dma.done [#allocation3], 256
    $region17: #{tpu_custom_call.1} parent=1 // pred_fallthru
      _
    // Predicated region
    $region18: #{tpu_custom_call.1} parent=1 // pred_check
      _
    $region19: #{tpu_custom_call.1} parent=1 // pred_check_branch
      %44 = sbr.rel (0) target = $region21
    $region20: #{tpu_custom_call.1} parent=1 // pred_region
      %46 = dma.done [#allocation6], 1024
    $region21: #{tpu_custom_call.1} parent=1 // pred_fallthru
      _
    %v47 = vld [vmem:[#allocation2] sm:$0xf]
    %v48 = vld [vmem:[#allocation2 + $0x4] sm:$0xf]
    %v49 = vld [vmem:[#allocation2 + $0x8] sm:$0xf]
    %v50 = vld [vmem:[#allocation2 + $0xc] sm:$0xf]
    %v51 = vld [vmem:[#allocation5] sm:$0xf]
    %v52 = vld [vmem:[#allocation5 + $0x4] sm:$0xf]
    %v53 = vld [vmem:[#allocation5 + $0x8] sm:$0xf]
    %v54 = vld [vmem:[#allocation5 + $0xc] sm:$0xf]
    %v55 = vld [vmem:[#allocation5 + $0x10] sm:$0xf]
    %v56 = vld [vmem:[#allocation5 + $0x14] sm:$0xf]
    %v57 = vld [vmem:[#allocation5 + $0x18] sm:$0xf]
    %v58 = vld [vmem:[#allocation5 + $0x1c] sm:$0xf]
    %v59 = vld [vmem:[#allocation5 + $0x20] sm:$0xf]
    %v60 = vld [vmem:[#allocation5 + $0x24] sm:$0xf]
    %v61 = vld [vmem:[#allocation5 + $0x28] sm:$0xf]
    %v62 = vld [vmem:[#allocation5 + $0x2c] sm:$0xf]
    %v63 = vld [vmem:[#allocation5 + $0x30] sm:$0xf]
    %v64 = vld [vmem:[#allocation5 + $0x34] sm:$0xf]
    %v65 = vld [vmem:[#allocation5 + $0x38] sm:$0xf]
    %v66 = vld [vmem:[#allocation5 + $0x3c] sm:$0xf]
    %v67 = vld [vmem:[%s2] sm:$0x1]
    %v69 = vperm.slane %v67, 0
    %v75 = vunpack.c.l.b16 %v47
    %v76 = vunpack.c.l.b16 %v48
    %v77 = vunpack.c.l.b16 %v49
    %v78 = vunpack.c.l.b16 %v50
    %v79 = vpack.c.b16 %v76, %v75
    %v80 = vpack.c.b16 %v78, %v77
    %v99 = vunpack.c.l.b16 %v51
    %v100 = vunpack.c.l.b16 %v52
    %v101 = vunpack.c.l.b16 %v53
    %v102 = vunpack.c.l.b16 %v54
    %v103 = vunpack.c.l.b16 %v55
    %v104 = vunpack.c.l.b16 %v56
    %v105 = vunpack.c.l.b16 %v57
    %v106 = vunpack.c.l.b16 %v58
    %v107 = vunpack.c.l.b16 %v59
    %v108 = vunpack.c.l.b16 %v60
    %v109 = vunpack.c.l.b16 %v61
    %v110 = vunpack.c.l.b16 %v62
    %v111 = vunpack.c.l.b16 %v63
    %v112 = vunpack.c.l.b16 %v64
    %v113 = vunpack.c.l.b16 %v65
    %v114 = vunpack.c.l.b16 %v66
    %v115 = vpack.c.b16 %v100, %v99
    %v116 = vpack.c.b16 %v102, %v101
    %v117 = vpack.c.b16 %v104, %v103
    %v118 = vpack.c.b16 %v106, %v105
    %v119 = vpack.c.b16 %v108, %v107
    %v120 = vpack.c.b16 %v110, %v109
    %v121 = vpack.c.b16 %v112, %v111
    %v122 = vpack.c.b16 %v114, %v113
    %131 = vmatpush.bf16.msra.mxu0 %v122
    %132 = vmatpush.bf16.msra.mxu0 %v121
    %133 = vmatpush.bf16.msra.mxu0 %v120
    %134 = vmatpush.bf16.msra.mxu0 %v119
    %135 = vmatpush.bf16.msra.mxu0 %v118
    %136 = vmatpush.bf16.msra.mxu0 %v117
    %137 = vmatpush.bf16.msra.mxu0 %v116
    %138 = vmatpush.bf16.msra.mxu0 %v115
    %139 = vmatmul.bf16.gmra.mxu0 %v79
    %v140 = vpop.f32.mrf.mxu0
    %v141 = vadd.f32 %v69, %v140
    %v142 = vpop.f32.mrf.mxu0
    %v143 = vadd.f32 %v69, %v142
    %144 = vmatmul.bf16.gmra.mxu0 %v80
    %v145 = vpop.f32.mrf.mxu0
    %v146 = vadd.f32 %v69, %v145
    %v147 = vpop.f32.mrf.mxu0
    %v148 = vadd.f32 %v69, %v147
    %149 = vdwg.mxu0
    %v150 = vmax.f32 %v141, 0.0
    %v151 = vmax.f32 %v143, 0.0
    %v152 = vmax.f32 %v146, 0.0
    %v153 = vmax.f32 %v148, 0.0
    %v154 = vpack.c.bf16 %v150, %v150
    %v155 = vpack.c.bf16 %v151, %v151
    %v156 = vpack.c.bf16 %v152, %v152
    %v157 = vpack.c.bf16 %v153, %v153
    %158 = vst [vmem:[#allocation7] sm:$0xf] %v154
    %159 = vst [vmem:[#allocation7 + $0x4] sm:$0xf] %v155
    %160 = vst [vmem:[#allocation7 + $0x8] sm:$0xf] %v156
    %161 = vst [vmem:[#allocation7 + $0xc] sm:$0xf] %v157
    // Predicated region
    $region22: #{tpu_custom_call.1} parent=1 // pred_check
      _
    $region23: #{tpu_custom_call.1} parent=1 // pred_check_branch
      %163 = sbr.rel (0) target = $region25
    $region24: #{tpu_custom_call.1} parent=1 // pred_region
      %165 = vsyncadd [#allocation4], 0
      %s166 = sshll.u32 [#allocation7], 4
      %s167 = int_to_ptr.vmem [resolvable:$true] %s166
      %s168 = sshll.u32 %s3, 4
      %s169 = int_to_ptr.hbm [resolvable:$true] %s168
      %174 = dma.vmem_to_hbm [thread:$0]  %s167, 256, %s169, [#allocation4], 64, 64, 4
    $region25: #{tpu_custom_call.1} parent=1 // pred_fallthru
      _
    // Predicated region
    $region26: #{tpu_custom_call.1} parent=1 // pred_check
      _
    $region27: #{tpu_custom_call.1} parent=1 // pred_check_branch
      %176 = sbr.rel (0) target = $region29
    $region28: #{tpu_custom_call.1} parent=1 // pred_region
      %178 = dma.done [#allocation4], 256
    $region29: #{tpu_custom_call.1} parent=1 // pred_fallthru
      _
    %179 = vsyncpa [#allocation3], 1
    %180 = vsyncpa [#allocation6], 1
    %181 = vsyncpa [#allocation4], 1

</llo_original>
